<compile_context>
chip_gen: v6e
topology: v6e:2x2x1
jax: 0.10.0
libtpu: 0.0.40
codegen_flags: <defaults>
</compile_context>

<pallas_src>
import functools

import numpy as np
import jax
import jax.numpy as jnp
from jax import lax
from jax.experimental import pallas as pl
from jax.experimental.pallas import tpu as pltpu

# ---------------------------------------------------------------------------
# Problem configuration (small, consistent with the module's semantics)
# ---------------------------------------------------------------------------
BS = 2                       # small default batch size
N_AGENTS = 3
N_ENEMIES = 5
N_ENTITIES = N_AGENTS + N_ENEMIES          # 8
STATE_NF_AL = 8              # per-ally state features
STATE_NF_EN = 6              # per-enemy state features
N_ACTIONS_NO_ATTACK = 6
N_ACTIONS = N_ACTIONS_NO_ATTACK + N_ENEMIES      # last_action_shape = 11
STATE_LAST_ACTION = True
ENTITY_EMBED_DIM = 32
ATTN_EMBED_DIM = 16
RNN_HIDDEN = 64

# feature widths fed to the linear encoders
F_ALLY = STATE_NF_AL + (N_ACTIONS_NO_ATTACK + 1) * (2 if STATE_LAST_ACTION else 1)   # 22
F_ENEMY = STATE_NF_EN + 1                                                            # 7

# fused feature layout (block-diagonal, with bias-selector columns):
#   [0 : F_ALLY)                       ally features       (ally rows)   else 0
#   [F_ALLY]                           1.0 ally-bias sel.   (ally rows)   else 0
#   [F_ALLY+1 : F_ALLY+1+F_ENEMY)      enemy features      (enemy rows)  else 0
#   [F_ALLY+1+F_ENEMY]                 1.0 enemy-bias sel.  (enemy rows)  else 0
F_FUSED = F_ALLY + 1 + F_ENEMY + 1                                                    # 31

# Max batch elements per grid tile: 64 * N_ENTITIES = 512 rows/tile.
# Big enough to amortize the ~0.35us per-step cost, small enough that the
# O(TILE_T^2) masked softmax waste and the (TILE_T,TILE_T) energy stay tiny
# (1 MiB f32) and fit v7x's 32 MiB default scoped VMEM with large headroom.
MAX_TILE_B = 64


# ---------------------------------------------------------------------------
# Pallas kernel: fused encoders + block-diagonal self-attention per row tile
# ---------------------------------------------------------------------------
def _state_encoder_kernel(feats_ref, wenc_ref, wqk_ref, bqk_ref, bias_ref,
                          out_ref, *, approx_recip):
    feats = feats_ref[...]                                   # (TILE_T, F_FUSED)

    # one fused matmul: block-diagonal weight already contains both encoders
    # and both biases (via the selector columns) -> no concatenate needed.
    ent = jnp.dot(feats, wenc_ref[...],
                  preferred_element_type=jnp.float32)        # (TILE_T, E)

    # fused query/key projection; 1/sqrt(A) scale already folded into w_q/b_q.
    qk = jnp.dot(ent, wqk_ref[...],
                 preferred_element_type=jnp.float32) + bqk_ref[...]   # (TILE_T, 2A)
    q = qk[:, :ATTN_EMBED_DIM]                               # (TILE_T, A), pre-scaled
    k = qk[:, ATTN_EMBED_DIM:]                               # (TILE_T, A)

    # energy_T[j, i] = k[j] . q[i]  == energy[i, j] of the torch code.
    energy_t = lax.dot_general(k, q, (((1,), (1,)), ((), ())),
                               preferred_element_type=jnp.float32)    # (TILE_T, TILE_T)

    # precomputed block-diagonal additive mask (0 on own batch block, -1e30 off it);
    # tiles are batch-aligned, so local row/col indices are exact.
    energy_t = energy_t + bias_ref[...]

    # torch: softmax(energy, dim=1) over query index i -> lane axis here.
    m = jnp.max(energy_t, axis=-1, keepdims=True)
    e = jnp.exp(energy_t - m)
    denom = jnp.sum(e, axis=-1, keepdims=True)
    attn_t = e * pl.reciprocal(denom, approx=approx_recip)

    # attn_out[j, :] = sum_i attn[i, j] * ent[i, :]  — plain row-major matmul.
    out_ref[...] = jnp.dot(attn_t, ent, preferred_element_type=jnp.float32)


# ---------------------------------------------------------------------------
# Parameter fusion — call ONCE per parameter update (hoisted out of forward)
# ---------------------------------------------------------------------------
def prepare_fused_params(params):
    """Block-diagonal encoder weight (biases folded in) + fused, pre-scaled Q/K."""
    scale = jnp.float32(1.0 / (ATTN_EMBED_DIM ** 0.5))
    w_enc = jnp.zeros((F_FUSED, ENTITY_EMBED_DIM), jnp.float32)
    w_enc = w_enc.at[:F_ALLY].set(params["w_ally"])
    w_enc = w_enc.at[F_ALLY].set(params["b_ally"][0])
    w_enc = w_enc.at[F_ALLY + 1:F_ALLY + 1 + F_ENEMY].set(params["w_enemy"])
    w_enc = w_enc.at[F_ALLY + 1 + F_ENEMY].set(params["b_enemy"][0])
    w_qk = jnp.concatenate([params["w_q"] * scale, params["w_k"]], axis=1)   # (E, 2A)
    b_qk = jnp.concatenate([params["b_q"] * scale, params["b_k"]], axis=1)   # (1, 2A)
    return {"w_enc": w_enc, "w_qk": w_qk, "b_qk": b_qk}


@functools.lru_cache(maxsize=None)
def _block_diag_bias_np(tile_t):
    """Compile-time-constant additive mask for one batch-aligned tile."""
    idx = np.arange(tile_t) // N_ENTITIES
    return np.where(idx[:, None] == idx[None, :], 0.0, -1e30).astype(np.float32)


# ---------------------------------------------------------------------------
# Wrapper: build fused features, run the tiled pallas_call, slice ally rows
# ---------------------------------------------------------------------------
def _build_fused_features(ally_feats, enemy_feats):
    """ally_feats (bs, N_AGENTS, F_ALLY); enemy_feats (bs, N_ENEMIES, F_ENEMY)."""
    bs = ally_feats.shape[0]
    dt = ally_feats.dtype
    ally_block = jnp.concatenate(
        [ally_feats,
         jnp.ones((bs, N_AGENTS, 1), dt),                    # ally-bias selector
         jnp.zeros((bs, N_AGENTS, F_ENEMY + 1), dt)],
        axis=-1)
    enemy_block = jnp.concatenate(
        [jnp.zeros((bs, N_ENEMIES, F_ALLY + 1), dt),
         enemy_feats,
         jnp.ones((bs, N_ENEMIES, 1), dt)],                  # enemy-bias selector
        axis=-1)
    feats = jnp.concatenate([ally_block, enemy_block], axis=1)   # (bs, NE, F_FUSED)
    return feats.reshape(bs * N_ENTITIES, F_FUSED)


def state_encoder_attention(ally_feats, enemy_feats, fused, *, approx_recip=True):
    bs = ally_feats.shape[0]
    feats = _build_fused_features(ally_feats, enemy_feats)       # (bs*NE, 31)

    # batch-aligned row tiling (tile boundaries are multiples of N_ENTITIES)
    tile_b = min(bs, MAX_TILE_B)
    bs_pad = -(-bs // tile_b) * tile_b
    if bs_pad != bs:
        pad_rows = (bs_pad - bs) * N_ENTITIES
        feats = jnp.concatenate(
            [feats, jnp.zeros((pad_rows, F_FUSED), feats.dtype)], axis=0)
    tile_t = tile_b * N_ENTITIES
    t_pad = bs_pad * N_ENTITIES
    num_tiles = t_pad // tile_t

    bias = jnp.asarray(_block_diag_bias_np(tile_t))              # (tile_t, tile_t)
    kernel = functools.partial(_state_encoder_kernel, approx_recip=approx_recip)

    out = pl.pallas_call(
        kernel,
        out_shape=jax.ShapeDtypeStruct((t_pad, ENTITY_EMBED_DIM), jnp.float32),
        grid=(num_tiles,),
        in_specs=[
            # streamed, auto double-buffered row tiles
            pl.BlockSpec((tile_t, F_FUSED), lambda i: (i, 0)),
            # weights + mask: constant index_map -> VMEM-resident, never re-DMA'd
            pl.BlockSpec((F_FUSED, ENTITY_EMBED_DIM), lambda i: (0, 0)),
            pl.BlockSpec((ENTITY_EMBED_DIM, 2 * ATTN_EMBED_DIM), lambda i: (0, 0)),
            pl.BlockSpec((1, 2 * ATTN_EMBED_DIM), lambda i: (0, 0)),
            pl.BlockSpec((tile_t, tile_t), lambda i: (0, 0)),
        ],
        out_specs=pl.BlockSpec((tile_t, ENTITY_EMBED_DIM), lambda i: (i, 0)),
        compiler_params=pltpu.CompilerParams(
            dimension_semantics=("parallel",)),                   # 2 TCs on v7x
    )(feats, fused["w_enc"], fused["w_qk"], fused["b_qk"], bias)

    # padded rows + ally-row slice handled here (free in XLA)
    out = out[:bs * N_ENTITIES].reshape(bs, N_ENTITIES, ENTITY_EMBED_DIM)
    return out[:, :N_AGENTS]


# ---------------------------------------------------------------------------
# Plain-JAX glue replicating the decomposer / forward bookkeeping
# ---------------------------------------------------------------------------
def decompose_state(states):
    """Synthetic decomposer: state = [ally | enemy | last-action-onehot]."""
    bs = states.shape[0]
    off = 0
    ally = states[:, off:off + N_AGENTS * STATE_NF_AL].reshape(bs, N_AGENTS, STATE_NF_AL)
    off += N_AGENTS * STATE_NF_AL
    enemy = states[:, off:off + N_ENEMIES * STATE_NF_EN].reshape(bs, N_ENEMIES, STATE_NF_EN)
    off += N_ENEMIES * STATE_NF_EN
    last_act = states[:, off:off + N_AGENTS * N_ACTIONS].reshape(bs, N_AGENTS, N_ACTIONS)
    return ally, enemy, last_act


def decompose_action_info(action_info):
    """Split one-hot actions into (no-attack, attack, compact) parts."""
    no_attack = action_info[..., :N_ACTIONS_NO_ATTACK]
    attack = action_info[..., N_ACTIONS_NO_ATTACK:]
    compact = jnp.concatenate([no_attack, attack.sum(-1, keepdims=True)], axis=-1)
    return no_attack, attack, compact


def _build_entity_features(states, actions):
    bs = states.shape[0]
    ally_states, enemy_states, last_action_states = decompose_state(states)

    onehot = jax.nn.one_hot(actions.reshape(-1), N_ACTIONS, dtype=states.dtype)
    _, cur_attack, cur_compact = decompose_action_info(onehot)
    cur_compact = cur_compact.reshape(bs, N_AGENTS, N_ACTIONS_NO_ATTACK + 1)
    ally_feats = jnp.concatenate([ally_states, cur_compact], axis=-1)

    cur_attack = cur_attack.reshape(bs, N_AGENTS, N_ENEMIES).sum(axis=1)
    attack_bit = (cur_attack > 0).astype(states.dtype).reshape(bs, N_ENEMIES, 1)
    enemy_feats = jnp.concatenate([enemy_states, attack_bit], axis=-1)

    if STATE_LAST_ACTION:
        _, _, last_compact = decompose_action_info(last_action_states)
        ally_feats = jnp.concatenate([ally_feats, last_compact], axis=-1)
    return ally_feats, enemy_feats


def state_encoder_forward(states, hidden_state, actions, fused, *, approx_recip=True):
    ally_feats, enemy_feats = _build_entity_features(states, actions)
    attn_out = state_encoder_attention(ally_feats, enemy_feats, fused,
                                       approx_recip=approx_recip)
    return attn_out, hidden_state


# pure-JAX reference (mirrors the torch math exactly) for sanity checks
def state_encoder_reference(states, hidden_state, actions, params):
    ally_feats, enemy_feats = _build_entity_features(states, actions)
    ally_e = ally_feats @ params["w_ally"] + params["b_ally"]
    enemy_e = enemy_feats @ params["w_enemy"] + params["b_enemy"]
    ent = jnp.concatenate([ally_e, enemy_e], axis=1)               # (bs, NE, E)
    q = ent @ params["w_q"] + params["b_q"]
    k = ent @ params["w_k"] + params["b_k"]
    energy = jnp.einsum("bia,bja->bij", q / (ATTN_EMBED_DIM ** 0.5), k)
    attn = jax.nn.softmax(energy, axis=1)                          # torch dim=1
    value = jnp.swapaxes(ent, 1, 2)                                # (bs, E, NE)
    out = jnp.swapaxes(jnp.einsum("bei,bij->bej", value, attn), 1, 2)
    return out[:, :N_AGENTS], hidden_state


def make_params(key):
    def linear(k, fan_in, fan_out):
        kw, kb = jax.random.split(k)
        bound = 1.0 / (fan_in ** 0.5)
        w = jax.random.uniform(kw, (fan_in, fan_out), jnp.float32, -bound, bound)
        b = jax.random.uniform(kb, (1, fan_out), jnp.float32, -bound, bound)
        return w, b

    ks = jax.random.split(key, 4)
    w_al, b_al = linear(ks[0], F_ALLY, ENTITY_EMBED_DIM)
    w_en, b_en = linear(ks[1], F_ENEMY, ENTITY_EMBED_DIM)
    w_q, b_q = linear(ks[2], ENTITY_EMBED_DIM, ATTN_EMBED_DIM)
    w_k, b_k = linear(ks[3], ENTITY_EMBED_DIM, ATTN_EMBED_DIM)
    return dict(w_ally=w_al, b_ally=b_al, w_enemy=w_en, b_enemy=b_en,
                w_q=w_q, b_q=b_q, w_k=w_k, b_k=b_k)


if __name__ == "__main__":
    key = jax.random.PRNGKey(0)
    k_param, k_small, k_big = jax.random.split(key, 3)

    params = make_params(k_param)
    fused = prepare_fused_params(params)      # hoisted: once per parameter update

    forward = jax.jit(state_encoder_forward, static_argnames=("approx_recip",))

    def make_inputs(k, bs):
        k_al, k_en, k_la, k_act, k_h = jax.random.split(k, 5)
        ally_nf = jax.random.normal(k_al, (bs, N_AGENTS, STATE_NF_AL), jnp.float32)
        enemy_nf = jax.random.normal(k_en, (bs, N_ENEMIES, STATE_NF_EN), jnp.float32)
        last_actions = jax.random.randint(k_la, (bs, N_AGENTS), 0, N_ACTIONS)
        last_onehot = jax.nn.one_hot(last_actions, N_ACTIONS, dtype=jnp.float32)
        states = jnp.concatenate(
            [ally_nf.reshape(bs, -1), enemy_nf.reshape(bs, -1),
             last_onehot.reshape(bs, -1)], axis=-1)                # (bs, 87)
        actions = jax.random.randint(k_act, (bs, N_AGENTS), 0, N_ACTIONS)
        hidden = jax.random.normal(k_h, (bs, N_AGENTS, RNN_HIDDEN), jnp.float32)
        return states, hidden, actions

    def check(bs, kdata, approx, atol, rtol):
        states, hidden, actions = make_inputs(kdata, bs)
        out, h = forward(states, hidden, actions, fused, approx_recip=approx)
        out = jax.block_until_ready(out)
        ref, _ = state_encoder_reference(states, hidden, actions, params)
        assert out.shape == (bs, N_AGENTS, ENTITY_EMBED_DIM)
        assert h.shape == hidden.shape
        err = float(jnp.max(jnp.abs(out - ref)))
        assert jnp.allclose(out, ref, atol=atol, rtol=rtol), (bs, approx, err)

    # small, module-consistent shape; exact reciprocal -> tight tolerance
    check(BS, k_small, approx=False, atol=1e-4, rtol=1e-4)
    # batched caller (bs=100 -> 800 valid rows, two 512-row tiles incl. padding);
    # exact build at tight tolerance, then the approx (EUP) production build.
    check(100, k_big, approx=False, atol=1e-4, rtol=1e-4)
    check(100, k_big, approx=True, atol=1e-2, rtol=1e-2)

    print("KERNEL_OK")
</pallas_src>

<mosaic_0001>
module attributes {stable_mosaic.version = 11 : i64} {
  func.func @_state_encoder_kernel(%arg0: i32, %arg1: memref<16x31xf32, #tpu.memory_space<vmem>>, %arg2: memref<31x32xf32, #tpu.memory_space<vmem>>, %arg3: memref<32x32xf32, #tpu.memory_space<vmem>>, %arg4: memref<1x32xf32, #tpu.memory_space<vmem>>, %arg5: memref<16x16xf32, #tpu.memory_space<vmem>>, %arg6: memref<16x32xf32, #tpu.memory_space<vmem>>) attributes {dimension_semantics = [#tpu.dimension_semantics<parallel>], iteration_bounds = array<i64: 1>, scalar_prefetch = 0 : i64, scratch_operands = 0 : i64, tpu.core_type = #tpu.core_type<tc>, window_params = [{transform_indices = @transform_0, window_bounds = array<i64: 16, 31>}, {pipeline_mode = #tpu.pipeline_mode<synchronous>, transform_indices = @transform_1, window_bounds = array<i64: 31, 32>}, {pipeline_mode = #tpu.pipeline_mode<synchronous>, transform_indices = @transform_2, window_bounds = array<i64: 32, 32>}, {pipeline_mode = #tpu.pipeline_mode<synchronous>, transform_indices = @transform_3, window_bounds = array<i64: 1, 32>}, {pipeline_mode = #tpu.pipeline_mode<synchronous>, transform_indices = @transform_4, window_bounds = array<i64: 16, 16>}, {transform_indices = @transform_5, window_bounds = array<i64: 16, 32>}]} {
    %c0 = arith.constant 0 : index
    %c0_0 = arith.constant 0 : index
    %0 = vector.load %arg1[%c0, %c0_0] : memref<16x31xf32, #tpu.memory_space<vmem>>, vector<16x31xf32>
    %c0_1 = arith.constant 0 : index
    %c0_2 = arith.constant 0 : index
    %1 = vector.load %arg2[%c0_1, %c0_2] : memref<31x32xf32, #tpu.memory_space<vmem>>, vector<31x32xf32>
    %cst = arith.constant dense<0.000000e+00> : vector<16x32xf32>
    %2 = tpu.matmul %0, %1, %cst {dimension_numbers = #tpu.dot_dimension_numbers<[1], [0], [0], [1], [0, 0, 1, 1], [], []>} : vector<16x31xf32>, vector<31x32xf32>, vector<16x32xf32> -> vector<16x32xf32>
    %c0_3 = arith.constant 0 : index
    %c0_4 = arith.constant 0 : index
    %3 = vector.load %arg3[%c0_3, %c0_4] : memref<32x32xf32, #tpu.memory_space<vmem>>, vector<32x32xf32>
    %cst_5 = arith.constant dense<0.000000e+00> : vector<16x32xf32>
    %4 = tpu.matmul %2, %3, %cst_5 {dimension_numbers = #tpu.dot_dimension_numbers<[1], [0], [0], [1], [0, 0, 1, 1], [], []>} : vector<16x32xf32>, vector<32x32xf32>, vector<16x32xf32> -> vector<16x32xf32>
    %c0_6 = arith.constant 0 : index
    %c0_7 = arith.constant 0 : index
    %5 = vector.load %arg4[%c0_6, %c0_7] : memref<1x32xf32, #tpu.memory_space<vmem>>, vector<1x32xf32>
    %6 = vector.broadcast %5 : vector<1x32xf32> to vector<16x32xf32>
    %7 = arith.addf %4, %6 : vector<16x32xf32>
    %8 = vector.extract_strided_slice %7 {offsets = [0, 0], sizes = [16, 16], strides = [1, 1]} : vector<16x32xf32> to vector<16x16xf32>
    %9 = vector.extract_strided_slice %7 {offsets = [0, 16], sizes = [16, 16], strides = [1, 1]} : vector<16x32xf32> to vector<16x16xf32>
    %cst_8 = arith.constant dense<0.000000e+00> : vector<16x16xf32>
    %10 = tpu.matmul %9, %8, %cst_8 {dimension_numbers = #tpu.dot_dimension_numbers<[1], [1], [0], [0], [0, 0, 1, 0], [], []>} : vector<16x16xf32>, vector<16x16xf32>, vector<16x16xf32> -> vector<16x16xf32>
    %c0_9 = arith.constant 0 : index
    %c0_10 = arith.constant 0 : index
    %11 = vector.load %arg5[%c0_9, %c0_10] : memref<16x16xf32, #tpu.memory_space<vmem>>, vector<16x16xf32>
    %12 = arith.addf %10, %11 : vector<16x16xf32>
    %cst_11 = arith.constant dense<0xFF800000> : vector<16xf32>
    %13 = vector.multi_reduction <maximumf>, %12, %cst_11 [1] : vector<16x16xf32> to vector<16xf32>
    %14 = vector.shape_cast %13 : vector<16xf32> to vector<16x1xf32>
    %15 = vector.broadcast %14 : vector<16x1xf32> to vector<16x16xf32>
    %16 = arith.subf %12, %15 : vector<16x16xf32>
    %17 = math.exp %16 : vector<16x16xf32>
    %cst_12 = arith.constant dense<0.000000e+00> : vector<16xf32>
    %18 = vector.multi_reduction <add>, %17, %cst_12 [1] : vector<16x16xf32> to vector<16xf32>
    %19 = vector.shape_cast %18 : vector<16xf32> to vector<16x1xf32>
    %20 = tpu.reciprocal %19 : vector<16x1xf32> -> vector<16x1xf32>
    %21 = vector.broadcast %20 : vector<16x1xf32> to vector<16x16xf32>
    %22 = arith.mulf %17, %21 : vector<16x16xf32>
    %cst_13 = arith.constant dense<0.000000e+00> : vector<16x32xf32>
    %23 = tpu.matmul %22, %2, %cst_13 {dimension_numbers = #tpu.dot_dimension_numbers<[1], [0], [0], [1], [0, 0, 1, 1], [], []>} : vector<16x16xf32>, vector<16x32xf32>, vector<16x32xf32> -> vector<16x32xf32>
    %c0_14 = arith.constant 0 : index
    %c0_15 = arith.constant 0 : index
    %24 = vector.load %arg6[%c0_14, %c0_15] : memref<16x32xf32, #tpu.memory_space<vmem>>, vector<16x32xf32>
    tpu.vector_store %arg6[%c0_14, %c0_15], %23 {strides = array<i32>} : memref<16x32xf32, #tpu.memory_space<vmem>>, vector<16x32xf32>,
    return
  }
  func.func @transform_0(%arg0: i32) -> (i32, i32) {
    %c0_i32 = arith.constant 0 : i32
    %c0_i32_0 = arith.constant 0 : i32
    return %arg0, %c0_i32 : i32, i32
  }
  func.func @transform_1(%arg0: i32) -> (i32, i32) {
    %c0_i32 = arith.constant 0 : i32
    %c0_i32_0 = arith.constant 0 : i32
    %c0_i32_1 = arith.constant 0 : i32
    return %c0_i32, %c0_i32_0 : i32, i32
  }
  func.func @transform_2(%arg0: i32) -> (i32, i32) {
    %c0_i32 = arith.constant 0 : i32
    %c0_i32_0 = arith.constant 0 : i32
    %c0_i32_1 = arith.constant 0 : i32
    return %c0_i32, %c0_i32_0 : i32, i32
  }
  func.func @transform_3(%arg0: i32) -> (i32, i32) {
    %c0_i32 = arith.constant 0 : i32
    %c0_i32_0 = arith.constant 0 : i32
    %c0_i32_1 = arith.constant 0 : i32
    return %c0_i32, %c0_i32_0 : i32, i32
  }
  func.func @transform_4(%arg0: i32) -> (i32, i32) {
    %c0_i32 = arith.constant 0 : i32
    %c0_i32_0 = arith.constant 0 : i32
    %c0_i32_1 = arith.constant 0 : i32
    return %c0_i32, %c0_i32_0 : i32, i32
  }
  func.func @transform_5(%arg0: i32) -> (i32, i32) {
    %c0_i32 = arith.constant 0 : i32
    %c0_i32_0 = arith.constant 0 : i32
    return %arg0, %c0_i32 : i32, i32
  }
}

</mosaic_0001>

<llo_original>
// kernel: eq.1
$region0: #{eq.1}
  %s0 = inlined_call_operand.vmem [shape: s32[2,3], index: 0, kind: input, shape index: {}]
  %s1 = inlined_call_operand.vmem [shape: s32[6], index: 1, kind: output, shape index: {}]
  $region1: #{eq.1} parent=0
    #allocation0 [shape = 'u8[4096]{0}', space=vmem, size = 0x1000, scoped, tag = 'scoped mem for output reshape']
    #allocation1 [shape = 'u8[4096]{0}', space=vmem, size = 0x1000, scoped, tag = 'scoped mem for input reshape']
    %s3 = sshll.u32 1, 2
    %s4 = ssub.s32 %s3, 1
    %v5 = vld [vmem:[%s0] sm:%s4]
    %6 = vst [vmem:[#allocation1] sm:%s4] %v5
    %v7 = vld [vmem:[#allocation1] sm:$0x1]
    %vm8 = vcmask 23552
    %9 = vst.msk [vmem:[#allocation0] sm:$0x1] %vm8, %v7
    %s10 = scalar_lea.vmem [#allocation1], 1
    %v11 = vld [vmem:[%s10] sm:$0x1]
    %12 = vrot.lane.b32.xlu0 %v11, 3
    %v13 = vpop.permute.xlu0 %12
    %vm14 = vcmask 48152
    %15 = vst.msk [vmem:[#allocation0] sm:$0x1] %vm14, %v13
    %s17 = sshll.u32 1, 1
    %s18 = ssub.s32 %s17, 1
    %v20 = vld [vmem:[#allocation0] sm:%s18]
    %s21 = sshll.u32 1, 1
    %s22 = ssub.s32 %s21, 1
    %23 = vst [vmem:[%s1] sm:%s22] %v20

// kernel: state_encoder_forward.1
$region0: #{state_encoder_forward.1}
  #allocation0 [shape = 'u32[]', space=smem, size = 0x4, offset = 0x4, fixed_abs, tag = 'smem constant byte address 0x4 - core index']
  #allocation1 [shape = 'u32[144,128]{1,0:T(1,128)}', space=vmem, size = 0x12000, scoped, tag = 'internal scratch']
  %s0 = inlined_call_operand.vmem [shape: f32[16,31], index: 0, kind: input, shape index: {}]
  %s1 = inlined_call_operand.vmem [shape: f32[31,32], index: 1, kind: input, shape index: {}]
  %s2 = inlined_call_operand.vmem [shape: f32[32,32], index: 2, kind: input, shape index: {}]
  %s3 = inlined_call_operand.vmem [shape: f32[1,32], index: 3, kind: input, shape index: {}]
  %s4 = inlined_call_operand.vmem [shape: f32[16,16], index: 4, kind: input, shape index: {}]
  %s5 = inlined_call_operand.vmem [shape: f32[16,32], index: 5, kind: output, shape index: {}]
  %s6 = sld [smem:[#allocation0]]
  $region30: #{state_encoder_forward.1} parent=0
    _
  %s8 = ssub.s32 1, %s6
  %s9 = scalar_select 0, %s8, %s6
  // Predicated region
  $region2: #{state_encoder_forward.1} parent=0 // pred_check
    _
  $region3: #{state_encoder_forward.1} parent=0 // pred_check_branch
    %11 = sbr.rel (0) target = $region5
  $region4: #{state_encoder_forward.1} parent=0 // pred_region
    _
  $region5: #{state_encoder_forward.1} parent=0 // pred_fallthru
    _
  // Predicated region
  $region6: #{state_encoder_forward.1} parent=0 // pred_check
    _
  $region7: #{state_encoder_forward.1} parent=0 // pred_check_branch
    %13 = sbr.rel (0) target = $region9
  $region8: #{state_encoder_forward.1} parent=0 // pred_region
    _
  $region9: #{state_encoder_forward.1} parent=0 // pred_fallthru
    _
  // Predicated region
  $region10: #{state_encoder_forward.1} parent=0 // pred_check
    _
  $region11: #{state_encoder_forward.1} parent=0 // pred_check_branch
    %15 = sbr.rel (0) target = $region13
  $region12: #{state_encoder_forward.1} parent=0 // pred_region
    _
  $region13: #{state_encoder_forward.1} parent=0 // pred_fallthru
    _
  // Predicated region
  $region14: #{state_encoder_forward.1} parent=0 // pred_check
    _
  $region15: #{state_encoder_forward.1} parent=0 // pred_check_branch
    %17 = sbr.rel (0) target = $region17
  $region16: #{state_encoder_forward.1} parent=0 // pred_region
    _
  $region17: #{state_encoder_forward.1} parent=0 // pred_fallthru
    _
  // Predicated region
  $region18: #{state_encoder_forward.1} parent=0 // pred_check
    _
  $region19: #{state_encoder_forward.1} parent=0 // pred_check_branch
    %19 = sbr.rel (0) target = $region21
  $region20: #{state_encoder_forward.1} parent=0 // pred_region
    _
  $region21: #{state_encoder_forward.1} parent=0 // pred_fallthru
    _
  %v20 = vld [vmem:[%s0] sm:$0xff]
  %v21 = vld [vmem:[%s0 + $0x8] sm:$0xff]
  %v22 = vld [vmem:[%s1] sm:$0xff]
  %v23 = vld [vmem:[%s1 + $0x8] sm:$0xff]
  %v24 = vld [vmem:[%s1 + $0x10] sm:$0xff]
  %v25 = vld [vmem:[%s1 + $0x18] sm:$0x7f]
  %vm26 = vcmask 252928
  %v28 = vsel %vm26, %v20, 0
  %v31 = vsel %vm26, %v21, 0
  %vm33 = vcmask 1046528
  %v35 = vsel %vm33, %v25, 0
  %37 = vmatprep.subr.mxu0 0.0
  %38 = vmatpush1.msra.mxu0 0.0
  %39 = vmatprep.subr.mxu0 0.0
  %40 = vmatpush1.msra.mxu0 0.0
  %41 = vmatprep.subr.mxu0 0.0
  %42 = vmatpush1.msra.mxu0 0.0
  %43 = vmatprep.subr.mxu0 0.0
  %44 = vmatpush1.msra.mxu0 0.0
  %45 = vmatprep.subr.mxu0 0.0
  %46 = vmatpush1.msra.mxu0 0.0
  %47 = vmatprep.subr.mxu0 0.0
  %48 = vmatpush1.msra.mxu0 0.0
  %49 = vmatprep.subr.mxu0 0.0
  %50 = vmatpush1.msra.mxu0 0.0
  %51 = vmatprep.subr.mxu0 0.0
  %52 = vmatpush1.msra.mxu0 0.0
  %53 = vmatprep.subr.mxu0 0.0
  %54 = vmatpush1.msra.mxu0 0.0
  %55 = vmatprep.subr.mxu0 0.0
  %56 = vmatpush1.msra.mxu0 0.0
  %57 = vmatprep.subr.mxu0 0.0
  %58 = vmatpush1.msra.mxu0 0.0
  %59 = vmatprep.subr.mxu0 0.0
  %60 = vmatpush1.msra.mxu0 0.0
  %61 = vmatprep.subr.mxu0 0.0
  %62 = vmatpush1.msra.mxu0 %v35
  %63 = vmatprep.subr.mxu0 0.0
  %64 = vmatpush1.msra.mxu0 %v24
  %65 = vmatprep.subr.mxu0 0.0
  %66 = vmatpush1.msra.mxu0 %v23
  %67 = vmatprep.subr.mxu0 0.0
  %68 = vmatpush1.msra.mxu0 %v22
  %69 = vmatprep.subr.mxu0 0.0
  %70 = vmatpush2.msra.mxu0 0.0
  %71 = vmatprep.subr.mxu0 0.0
  %72 = vmatpush2.msra.mxu0 0.0
  %73 = vmatprep.subr.mxu0 0.0
  %74 = vmatpush2.msra.mxu0 0.0
  %75 = vmatprep.subr.mxu0 0.0
  %76 = vmatpush2.msra.mxu0 0.0
  %77 = vmatprep.subr.mxu0 0.0
  %78 = vmatpush2.msra.mxu0 0.0
  %79 = vmatprep.subr.mxu0 0.0
  %80 = vmatpush2.msra.mxu0 0.0
  %81 = vmatprep.subr.mxu0 0.0
  %82 = vmatpush2.msra.mxu0 0.0
  %83 = vmatprep.subr.mxu0 0.0
  %84 = vmatpush2.msra.mxu0 0.0
  %85 = vmatprep.subr.mxu0 0.0
  %86 = vmatpush2.msra.mxu0 0.0
  %87 = vmatprep.subr.mxu0 0.0
  %88 = vmatpush2.msra.mxu0 0.0
  %89 = vmatprep.subr.mxu0 0.0
  %90 = vmatpush2.msra.mxu0 0.0
  %91 = vmatprep.subr.mxu0 0.0
  %92 = vmatpush2.msra.mxu0 0.0
  %93 = vmatprep.subr.mxu0 0.0
  %94 = vmatpush2.msra.mxu0 0.0
  %95 = vmatprep.subr.mxu0 0.0
  %96 = vmatpush2.msra.mxu0 0.0
  %97 = vmatprep.subr.mxu0 0.0
  %98 = vmatpush2.msra.mxu0 0.0
  %99 = vmatprep.subr.mxu0 0.0
  %100 = vmatpush2.msra.mxu0 0.0
  %101 = vmatprep.mubr.f32.mxu0 0.0
  %102 = vmatmul.mubr.f32.gmra.mxu0 %v28
  %v103 = vpop.f32.mrf.mxu0
  %v104 = vadd.f32 0.0, %v103
  %v105 = vpop.f32.mrf.mxu0
  %106 = vmatprep.mubr.f32.mxu0 0.0
  %107 = vmatmul.mubr.f32.gmra.mxu0 %v31
  %v108 = vpop.f32.mrf.mxu0
  %v109 = vadd.f32 0.0, %v108
  %v110 = vpop.f32.mrf.mxu0
  %111 = vdwg.mxu0
  %v112 = vld [vmem:[%s2] sm:$0xff]
  %v113 = vld [vmem:[%s2 + $0x8] sm:$0xff]
  %v114 = vld [vmem:[%s2 + $0x10] sm:$0xff]
  %v115 = vld [vmem:[%s2 + $0x18] sm:$0xff]
  %v116 = vld [vmem:[%s3] sm:$0x1]
  %v118 = vlaneseq
  %v119 = vshrl.u32 %v118, 7
  %v120 = vsub.s32 0, %v119
  %v121 = vrot.slane %v116, %v120
  %vm123 = vcmask 261120
  %v125 = vsel %vm123, %v104, 0
  %v128 = vsel %vm123, %v109, 0
  %130 = vmatprep.subr.mxu0 0.0
  %131 = vmatpush1.msra.mxu0 0.0
  %132 = vmatprep.subr.mxu0 0.0
  %133 = vmatpush1.msra.mxu0 0.0
  %134 = vmatprep.subr.mxu0 0.0
  %135 = vmatpush1.msra.mxu0 0.0
  %136 = vmatprep.subr.mxu0 0.0
  %137 = vmatpush1.msra.mxu0 0.0
  %138 = vmatprep.subr.mxu0 0.0
  %139 = vmatpush1.msra.mxu0 0.0
  %140 = vmatprep.subr.mxu0 0.0
  %141 = vmatpush1.msra.mxu0 0.0
  %142 = vmatprep.subr.mxu0 0.0
  %143 = vmatpush1.msra.mxu0 0.0
  %144 = vmatprep.subr.mxu0 0.0
  %145 = vmatpush1.msra.mxu0 0.0
  %146 = vmatprep.subr.mxu0 0.0
  %147 = vmatpush1.msra.mxu0 0.0
  %148 = vmatprep.subr.mxu0 0.0
  %149 = vmatpush1.msra.mxu0 0.0
  %150 = vmatprep.subr.mxu0 0.0
  %151 = vmatpush1.msra.mxu0 0.0
  %152 = vmatprep.subr.mxu0 0.0
  %153 = vmatpush1.msra.mxu0 0.0
  %154 = vmatprep.subr.mxu0 0.0
  %155 = vmatpush1.msra.mxu0 %v115
  %156 = vmatprep.subr.mxu0 0.0
  %157 = vmatpush1.msra.mxu0 %v114
  %158 = vmatprep.subr.mxu0 0.0
  %159 = vmatpush1.msra.mxu0 %v113
  %160 = vmatprep.subr.mxu0 0.0
  %161 = vmatpush1.msra.mxu0 %v112
  %162 = vmatprep.subr.mxu0 0.0
  %163 = vmatpush2.msra.mxu0 0.0
  %164 = vmatprep.subr.mxu0 0.0
  %165 = vmatpush2.msra.mxu0 0.0
  %166 = vmatprep.subr.mxu0 0.0
  %167 = vmatpush2.msra.mxu0 0.0
  %168 = vmatprep.subr.mxu0 0.0
  %169 = vmatpush2.msra.mxu0 0.0
  %170 = vmatprep.subr.mxu0 0.0
  %171 = vmatpush2.msra.mxu0 0.0
  %172 = vmatprep.subr.mxu0 0.0
  %173 = vmatpush2.msra.mxu0 0.0
  %174 = vmatprep.subr.mxu0 0.0
  %175 = vmatpush2.msra.mxu0 0.0
  %176 = vmatprep.subr.mxu0 0.0
  %177 = vmatpush2.msra.mxu0 0.0
  %178 = vmatprep.subr.mxu0 0.0
  %179 = vmatpush2.msra.mxu0 0.0
  %180 = vmatprep.subr.mxu0 0.0
  %181 = vmatpush2.msra.mxu0 0.0
  %182 = vmatprep.subr.mxu0 0.0
  %183 = vmatpush2.msra.mxu0 0.0
  %184 = vmatprep.subr.mxu0 0.0
  %185 = vmatpush2.msra.mxu0 0.0
  %186 = vmatprep.subr.mxu0 0.0
  %187 = vmatpush2.msra.mxu0 0.0
  %188 = vmatprep.subr.mxu0 0.0
  %189 = vmatpush2.msra.mxu0 0.0
  %190 = vmatprep.subr.mxu0 0.0
  %191 = vmatpush2.msra.mxu0 0.0
  %192 = vmatprep.subr.mxu0 0.0
  %193 = vmatpush2.msra.mxu0 0.0
  %194 = vmatprep.mubr.f32.mxu0 0.0
  %195 = vmatmul.mubr.f32.gmra.mxu0 %v125
  %v196 = vpop.f32.mrf.mxu0
  %v197 = vadd.f32 %v121, %v196
  %v198 = vpop.f32.mrf.mxu0
  %199 = vmatprep.mubr.f32.mxu0 0.0
  %200 = vmatmul.mubr.f32.gmra.mxu0 %v128
  %v201 = vpop.f32.mrf.mxu0
  %v202 = vadd.f32 %v121, %v201
  %v203 = vpop.f32.mrf.mxu0
  %204 = vdwg.mxu0
  %v205 = vld [vmem:[%s4] sm:$0xff]
  %v206 = vld [vmem:[%s4 + $0x8] sm:$0xff]
  %209 = vrot.lane.b32.xlu0 %v197, 112
  %v210 = vpop.permute.xlu0 %209
  %211 = vrot.lane.b32.xlu0 %v202, 112
  %v212 = vpop.permute.xlu0 %211
  %vm213 = vcmask 130048
  %v214 = vsel %vm213, %v210, 0
  %v216 = vsel %vm213, %v212, 0
  %v218 = vsel %vm213, %v197, 0
  %v220 = vsel %vm213, %v202, 0
  %222 = vmatprep.subr.mxu0 0.0
  %223 = vmatpush1.xpose.msra.mxu0 0.0
  %224 = vmatprep.subr.mxu0 0.0
  %225 = vmatpush1.xpose.msra.mxu0 0.0
  %226 = vmatprep.subr.mxu0 0.0
  %227 = vmatpush1.xpose.msra.mxu0 0.0
  %228 = vmatprep.subr.mxu0 0.0
  %229 = vmatpush1.xpose.msra.mxu0 0.0
  %230 = vmatprep.subr.mxu0 0.0
  %231 = vmatpush1.xpose.msra.mxu0 0.0
  %232 = vmatprep.subr.mxu0 0.0
  %233 = vmatpush1.xpose.msra.mxu0 0.0
  %234 = vmatprep.subr.mxu0 0.0
  %235 = vmatpush1.xpose.msra.mxu0 0.0
  %236 = vmatprep.subr.mxu0 0.0
  %237 = vmatpush1.xpose.msra.mxu0 0.0
  %238 = vmatprep.subr.mxu0 0.0
  %239 = vmatpush1.xpose.msra.mxu0 0.0
  %240 = vmatprep.subr.mxu0 0.0
  %241 = vmatpush1.xpose.msra.mxu0 0.0
  %242 = vmatprep.subr.mxu0 0.0
  %243 = vmatpush1.xpose.msra.mxu0 0.0
  %244 = vmatprep.subr.mxu0 0.0
  %245 = vmatpush1.xpose.msra.mxu0 0.0
  %246 = vmatprep.subr.mxu0 0.0
  %247 = vmatpush1.xpose.msra.mxu0 0.0
  %248 = vmatprep.subr.mxu0 0.0
  %249 = vmatpush1.xpose.msra.mxu0 0.0
  %250 = vmatprep.subr.mxu0 0.0
  %251 = vmatpush1.xpose.msra.mxu0 %v220
  %252 = vmatprep.subr.mxu0 0.0
  %253 = vmatpush1.xpose.msra.mxu0 %v218
  %254 = vmatprep.subr.mxu0 0.0
  %255 = vmatpush2.xpose.msra.mxu0 0.0
  %256 = vmatprep.subr.mxu0 0.0
  %257 = vmatpush2.xpose.msra.mxu0 0.0
  %258 = vmatprep.subr.mxu0 0.0
  %259 = vmatpush2.xpose.msra.mxu0 0.0
  %260 = vmatprep.subr.mxu0 0.0
  %261 = vmatpush2.xpose.msra.mxu0 0.0
  %262 = vmatprep.subr.mxu0 0.0
  %263 = vmatpush2.xpose.msra.mxu0 0.0
  %264 = vmatprep.subr.mxu0 0.0
  %265 = vmatpush2.xpose.msra.mxu0 0.0
  %266 = vmatprep.subr.mxu0 0.0
  %267 = vmatpush2.xpose.msra.mxu0 0.0
  %268 = vmatprep.subr.mxu0 0.0
  %269 = vmatpush2.xpose.msra.mxu0 0.0
  %270 = vmatprep.subr.mxu0 0.0
  %271 = vmatpush2.xpose.msra.mxu0 0.0
  %272 = vmatprep.subr.mxu0 0.0
  %273 = vmatpush2.xpose.msra.mxu0 0.0
  %274 = vmatprep.subr.mxu0 0.0
  %275 = vmatpush2.xpose.msra.mxu0 0.0
  %276 = vmatprep.subr.mxu0 0.0
  %277 = vmatpush2.xpose.msra.mxu0 0.0
  %278 = vmatprep.subr.mxu0 0.0
  %279 = vmatpush2.xpose.msra.mxu0 0.0
  %280 = vmatprep.subr.mxu0 0.0
  %281 = vmatpush2.xpose.msra.mxu0 0.0
  %282 = vmatprep.subr.mxu0 0.0
  %283 = vmatpush2.xpose.msra.mxu0 0.0
  %284 = vmatprep.subr.mxu0 0.0
  %285 = vmatpush2.xpose.msra.mxu0 0.0
  %286 = vmatprep.mubr.f32.mxu0 0.0
  %287 = vmatmul.mubr.f32.gmra.mxu0 %v214
  %v288 = vpop.f32.mrf.mxu0
  %v289 = vadd.f32 %v205, %v288
  %v290 = vpop.f32.mrf.mxu0
  %291 = vmatprep.mubr.f32.mxu0 0.0
  %292 = vmatmul.mubr.f32.gmra.mxu0 %v216
  %v293 = vpop.f32.mrf.mxu0
  %v294 = vadd.f32 %v206, %v293
  %v295 = vpop.f32.mrf.mxu0
  %296 = vdwg.mxu0
  %v297 = vsel %vm213, %v289, -inf
  %298 = vmax.xlane.f32.xlu0 %v297
  %v299 = vpop.xlane.xlu0 %298
  %v300 = vsel %vm213, %v294, -inf
  %301 = vmax.xlane.f32.xlu0 %v300
  %v302 = vpop.xlane.xlu0 %301
  %v303 = vsub.f32 %v289, %v299
  %v304 = vsub.f32 %v294, %v302
  %v305 = vmul.f32 %v303, 1.442695
  %v306 = vpow.pop %v305
  %v307 = vmul.f32 %v304, 1.442695
  %v308 = vpow.pop %v307
  %v309 = vsel %vm213, %v306, 0.0
  %310 = vadd.xlane.f32.xlu0 %v309
  %v311 = vpop.xlane.xlu0 %310
  %v312 = vsel %vm213, %v308, 0.0
  %313 = vadd.xlane.f32.xlu0 %v312
  %v314 = vpop.xlane.xlu0 %313
  %v315 = vrcp.pop %v311
  %v316 = vrcp.pop %v314
  %v317 = vmul.f32 %v306, %v315
  %v318 = vmul.f32 %v308, %v316
  %v320 = vsel %vm213, %v317, 0
  %v323 = vsel %vm213, %v318, 0
  %325 = vmatprep.subr.mxu0 0.0
  %326 = vmatpush1.msra.mxu0 0.0
  %327 = vmatprep.subr.mxu0 0.0
  %328 = vmatpush1.msra.mxu0 0.0
  %329 = vmatprep.subr.mxu0 0.0
  %330 = vmatpush1.msra.mxu0 0.0
  %331 = vmatprep.subr.mxu0 0.0
  %332 = vmatpush1.msra.mxu0 0.0
  %333 = vmatprep.subr.mxu0 0.0
  %334 = vmatpush1.msra.mxu0 0.0
  %335 = vmatprep.subr.mxu0 0.0
  %336 = vmatpush1.msra.mxu0 0.0
  %337 = vmatprep.subr.mxu0 0.0
  %338 = vmatpush1.msra.mxu0 0.0
  %339 = vmatprep.subr.mxu0 0.0
  %340 = vmatpush1.msra.mxu0 0.0
  %341 = vmatprep.subr.mxu0 0.0
  %342 = vmatpush1.msra.mxu0 0.0
  %343 = vmatprep.subr.mxu0 0.0
  %344 = vmatpush1.msra.mxu0 0.0
  %345 = vmatprep.subr.mxu0 0.0
  %346 = vmatpush1.msra.mxu0 0.0
  %347 = vmatprep.subr.mxu0 0.0
  %348 = vmatpush1.msra.mxu0 0.0
  %349 = vmatprep.subr.mxu0 0.0
  %350 = vmatpush1.msra.mxu0 0.0
  %351 = vmatprep.subr.mxu0 0.0
  %352 = vmatpush1.msra.mxu0 0.0
  %353 = vmatprep.subr.mxu0 0.0
  %354 = vmatpush1.msra.mxu0 %v109
  %355 = vmatprep.subr.mxu0 0.0
  %356 = vmatpush1.msra.mxu0 %v104
  %357 = vmatprep.subr.mxu0 0.0
  %358 = vmatpush2.msra.mxu0 0.0
  %359 = vmatprep.subr.mxu0 0.0
  %360 = vmatpush2.msra.mxu0 0.0
  %361 = vmatprep.subr.mxu0 0.0
  %362 = vmatpush2.msra.mxu0 0.0
  %363 = vmatprep.subr.mxu0 0.0
  %364 = vmatpush2.msra.mxu0 0.0
  %365 = vmatprep.subr.mxu0 0.0
  %366 = vmatpush2.msra.mxu0 0.0
  %367 = vmatprep.subr.mxu0 0.0
  %368 = vmatpush2.msra.mxu0 0.0
  %369 = vmatprep.subr.mxu0 0.0
  %370 = vmatpush2.msra.mxu0 0.0
  %371 = vmatprep.subr.mxu0 0.0
  %372 = vmatpush2.msra.mxu0 0.0
  %373 = vmatprep.subr.mxu0 0.0
  %374 = vmatpush2.msra.mxu0 0.0
  %375 = vmatprep.subr.mxu0 0.0
  %376 = vmatpush2.msra.mxu0 0.0
  %377 = vmatprep.subr.mxu0 0.0
  %378 = vmatpush2.msra.mxu0 0.0
  %379 = vmatprep.subr.mxu0 0.0
  %380 = vmatpush2.msra.mxu0 0.0
  %381 = vmatprep.subr.mxu0 0.0
  %382 = vmatpush2.msra.mxu0 0.0
  %383 = vmatprep.subr.mxu0 0.0
  %384 = vmatpush2.msra.mxu0 0.0
  %385 = vmatprep.subr.mxu0 0.0
  %386 = vmatpush2.msra.mxu0 0.0
  %387 = vmatprep.subr.mxu0 0.0
  %388 = vmatpush2.msra.mxu0 0.0
  %389 = vmatprep.mubr.f32.mxu0 0.0
  %390 = vmatmul.mubr.f32.gmra.mxu0 %v320
  %v391 = vpop.f32.mrf.mxu0
  %v392 = vadd.f32 0.0, %v391
  %v393 = vpop.f32.mrf.mxu0
  %394 = vmatprep.mubr.f32.mxu0 0.0
  %395 = vmatmul.mubr.f32.gmra.mxu0 %v323
  %v396 = vpop.f32.mrf.mxu0
  %v397 = vadd.f32 0.0, %v396
  %v398 = vpop.f32.mrf.mxu0
  %399 = vdwg.mxu0
  %400 = vst.msk [vmem:[%s5] sm:$0xff] %vm123, %v392
  %401 = vst.msk [vmem:[%s5 + $0x8] sm:$0xff] %vm123, %v397
  // Predicated region
  $region22: #{state_encoder_forward.1} parent=0 // pred_check
    _
  $region23: #{state_encoder_forward.1} parent=0 // pred_check_branch
    %403 = sbr.rel (0) target = $region25
  $region24: #{state_encoder_forward.1} parent=0 // pred_region
    _
  $region25: #{state_encoder_forward.1} parent=0 // pred_fallthru
    _
  // Predicated region
  $region26: #{state_encoder_forward.1} parent=0 // pred_check
    _
  $region27: #{state_encoder_forward.1} parent=0 // pred_check_branch
    %405 = sbr.rel (0) target = $region29
  $region28: #{state_encoder_forward.1} parent=0 // pred_region
    _
  $region29: #{state_encoder_forward.1} parent=0 // pred_fallthru
    _

</llo_original>
